<compile_context>
chip_gen: v7x
topology: tpu7x:2x2x1
jax: 0.10.0
libtpu: 0.0.40
codegen_flags: <defaults>
</compile_context>

<pallas_src>
import functools
import math

import jax
import jax.numpy as jnp
import numpy as np
from jax.experimental import pallas as pl
from jax.experimental.pallas import tpu as pltpu


def _pe_add_kernel(x_ref, c1_ref, c0_ref, o_ref, *, rows_per_block):
    """o = x + sin(row * c1 + c0), where `row` is the global row index of each element."""
    x = x_ref[...]                                              # (1, TR, L)
    r0 = pl.program_id(1) * rows_per_block
    row = r0 + jax.lax.broadcasted_iota(jnp.int32, x.shape, dimension=1)
    angle = row.astype(jnp.float32) * c1_ref[...] + c0_ref[...]  # (1, L) broadcasts
    pe = jnp.sin(angle)
    # Do the add in f32 (free for f32 inputs, more accurate for bf16) then cast back.
    o_ref[...] = (x.astype(jnp.float32) + pe).astype(o_ref.dtype)


def _pe_constants(d_model, group):
    """Compile-time (1, L) constants, L = group * d_model.

    pe(pos, d) = sin(pos * inv_freq[d] + phase[d]),  phase = 0 (even d) / pi/2 (odd d),
    inv_freq[d] = exp(2*(d//2) * (-ln(10000)/d_model))   (matches the PyTorch buffer).
    With G positions folded per row:  pos = row*G + lane//d_model,  d = lane % d_model
      => angle = row * c1[lane] + c0[lane].
    """
    L = group * d_model
    lane = np.arange(L)
    dim = lane % d_model
    posoff = lane // d_model
    inv_freq = np.exp((dim // 2).astype(np.float64) * (-2.0 * np.log(10000.0) / d_model))
    phase = (dim % 2).astype(np.float64) * (np.pi / 2.0)        # cos(x) == sin(x + pi/2)
    c1 = (group * inv_freq).astype(np.float32)[None, :]         # (1, L)
    c0 = (posoff * inv_freq + phase).astype(np.float32)[None, :]
    return c1, c0


def _pick_group(seq_len, d_model, max_lanes=2048):
    """Fold G positions/row so G*d_model is a multiple of 128 (lane-dense), with G | S."""
    if d_model % 128 == 0:
        return 1
    g0 = 128 // math.gcd(d_model, 128)
    best, g = 1, g0
    while g <= seq_len and g * d_model <= max_lanes:
        if seq_len % g == 0:
            best = g
        g += g0
    return best            # falls back to 1 (correct, just not lane-dense) if none found


def _pick_rows_per_block(num_rows, lane_width, itemsize, target_bytes=2 * 1024 * 1024):
    """Rows per block so one buffer stays ~<= target_bytes (double-buffered in + out
    then fits comfortably inside v5e's 16 MiB scoped-VMEM default and smaller v7x VMEM)."""
    cap = max(1, target_bytes // (lane_width * itemsize))
    if num_rows <= cap:
        return num_rows
    return min(max(8, (cap // 8) * 8), num_rows)


def positional_encoding(x, *, inplace=True):
    """x: (B, S, D) -> x + pe[:, :S]   (same semantics as the PyTorch module).

    With inplace=True the output aliases the input buffer at the pallas_call boundary
    (caller should treat x as consumed).
    """
    B, S, D = x.shape
    G = _pick_group(S, D)
    L = G * D
    R = S // G                                 # G divides S by construction
    x3 = x.reshape(B, R, L) if G > 1 else x

    c1, c0 = _pe_constants(D, G)
    TR = _pick_rows_per_block(R, L, x.dtype.itemsize)
    grid = (B, pl.cdiv(R, TR))

    kernel = functools.partial(_pe_add_kernel, rows_per_block=TR)
    out = pl.pallas_call(
        kernel,
        out_shape=jax.ShapeDtypeStruct((B, R, L), x.dtype),
        grid_spec=pltpu.PrefetchScalarGridSpec(
            num_scalar_prefetch=0,
            grid=grid,
            in_specs=[
                pl.BlockSpec((1, TR, L), lambda b, r: (b, r, 0)),
                pl.BlockSpec((1, L), lambda b, r: (0, 0)),   # stays resident in VMEM
                pl.BlockSpec((1, L), lambda b, r: (0, 0)),
            ],
            out_specs=pl.BlockSpec((1, TR, L), lambda b, r: (b, r, 0)),
        ),
        compiler_params=pltpu.CompilerParams(
            dimension_semantics=("parallel", "parallel"),
        ),
        input_output_aliases={0: 0} if inplace else {},
    )(x3, c1, c0)
    return out.reshape(B, S, D) if G > 1 else out


def _reference(x_np):
    """Pure-numpy reference mirroring the PyTorch module."""
    _, S, D = x_np.shape
    pe = np.zeros((S, D), dtype=np.float32)
    position = np.arange(0, S, dtype=np.float32)[:, None]
    div_term = np.exp(np.arange(0, D, 2, dtype=np.float32) * (-np.log(10000.0) / D))
    pe[:, 0::2] = np.sin(position * div_term)
    pe[:, 1::2] = np.cos(position * div_term)
    return x_np + pe[None, :, :]


if __name__ == "__main__":
    key = jax.random.PRNGKey(0)
    B, S, D = 2, 8, 32                      # batch=2, seq=8, d_model=32
    x = jax.random.normal(key, (B, S, D), dtype=jnp.float32)

    x_np = np.asarray(x)                    # snapshot before the (in-place) kernel call
    ref = _reference(x_np)

    out = jax.block_until_ready(positional_encoding(x))

    np.testing.assert_allclose(np.asarray(out), ref, rtol=2e-5, atol=2e-5)
    print("KERNEL_OK")
</pallas_src>

<mosaic_0001>
module attributes {stable_mosaic.version = 11 : i64} {
  func.func @_pe_add_kernel(%arg0: i32, %arg1: i32, %arg2: memref<1x1x256xf32, #tpu.memory_space<vmem>>, %arg3: memref<1x256xf32, #tpu.memory_space<vmem>>, %arg4: memref<1x256xf32, #tpu.memory_space<vmem>>, %arg5: memref<1x1x256xf32, #tpu.memory_space<vmem>>) attributes {dimension_semantics = [#tpu.dimension_semantics<parallel>, #tpu.dimension_semantics<parallel>], iteration_bounds = array<i64: 2, 1>, scalar_prefetch = 0 : i64, scratch_operands = 0 : i64, tpu.core_type = #tpu.core_type<tc>, window_params = [{transform_indices = @transform_0, window_bounds = array<i64: 1, 1, 256>}, {pipeline_mode = #tpu.pipeline_mode<synchronous>, transform_indices = @transform_1, window_bounds = array<i64: 1, 256>}, {pipeline_mode = #tpu.pipeline_mode<synchronous>, transform_indices = @transform_2, window_bounds = array<i64: 1, 256>}, {transform_indices = @transform_3, window_bounds = array<i64: 1, 1, 256>}]} {
    %c0 = arith.constant 0 : index
    %c0_0 = arith.constant 0 : index
    %c0_1 = arith.constant 0 : index
    %0 = vector.load %arg2[%c0, %c0_0, %c0_1] : memref<1x1x256xf32, #tpu.memory_space<vmem>>, vector<1x1x256xf32>
    %c1_i32 = arith.constant 1 : i32
    %1 = arith.muli %arg1, %c1_i32 : i32
    %2 = tpu.iota {dimensions = array<i32: 1>} : vector<1x1x256xi32>
    %3 = vector.broadcast %1 : i32 to vector<1x1x256xi32>
    %4 = arith.addi %3, %2 : vector<1x1x256xi32>
    %5 = arith.sitofp %4 : vector<1x1x256xi32> to vector<1x1x256xf32>
    %c0_2 = arith.constant 0 : index
    %c0_3 = arith.constant 0 : index
    %6 = vector.load %arg3[%c0_2, %c0_3] : memref<1x256xf32, #tpu.memory_space<vmem>>, vector<1x256xf32>
    %7 = vector.shape_cast %6 : vector<1x256xf32> to vector<1x1x256xf32>
    %8 = arith.mulf %5, %7 : vector<1x1x256xf32>
    %c0_4 = arith.constant 0 : index
    %c0_5 = arith.constant 0 : index
    %9 = vector.load %arg4[%c0_4, %c0_5] : memref<1x256xf32, #tpu.memory_space<vmem>>, vector<1x256xf32>
    %10 = vector.shape_cast %9 : vector<1x256xf32> to vector<1x1x256xf32>
    %11 = arith.addf %8, %10 : vector<1x1x256xf32>
    %12 = math.sin %11 : vector<1x1x256xf32>
    %13 = arith.addf %0, %12 : vector<1x1x256xf32>
    %c0_6 = arith.constant 0 : index
    %c0_7 = arith.constant 0 : index
    %c0_8 = arith.constant 0 : index
    %14 = vector.load %arg5[%c0_6, %c0_7, %c0_8] : memref<1x1x256xf32, #tpu.memory_space<vmem>>, vector<1x1x256xf32>
    tpu.vector_store %arg5[%c0_6, %c0_7, %c0_8], %13 {strides = array<i32>} : memref<1x1x256xf32, #tpu.memory_space<vmem>>, vector<1x1x256xf32>,
    return
  }
  func.func @transform_0(%arg0: i32, %arg1: i32) -> (i32, i32, i32) {
    %c0_i32 = arith.constant 0 : i32
    %c0_i32_0 = arith.constant 0 : i32
    return %arg0, %arg1, %c0_i32 : i32, i32, i32
  }
  func.func @transform_1(%arg0: i32, %arg1: i32) -> (i32, i32) {
    %c0_i32 = arith.constant 0 : i32
    %c0_i32_0 = arith.constant 0 : i32
    %c0_i32_1 = arith.constant 0 : i32
    return %c0_i32, %c0_i32_0 : i32, i32
  }
  func.func @transform_2(%arg0: i32, %arg1: i32) -> (i32, i32) {
    %c0_i32 = arith.constant 0 : i32
    %c0_i32_0 = arith.constant 0 : i32
    %c0_i32_1 = arith.constant 0 : i32
    return %c0_i32, %c0_i32_0 : i32, i32
  }
  func.func @transform_3(%arg0: i32, %arg1: i32) -> (i32, i32, i32) {
    %c0_i32 = arith.constant 0 : i32
    %c0_i32_0 = arith.constant 0 : i32
    return %arg0, %arg1, %c0_i32 : i32, i32, i32
  }
}

</mosaic_0001>

<llo_original>
// kernel: tpu_custom_call.1
$region0: #{tpu_custom_call.1}
  #allocation0 [shape = 'u32[]', space=smem, size = 0x4, offset = 0x4, fixed_abs, tag = 'smem constant byte address 0x4 - core index']
  #allocation1 [shape = 'u32[144,128]{1,0:T(1,128)}', space=vmem, size = 0x12000, scoped, tag = 'internal scratch']
  %s0 = inlined_call_operand.hbm [shape: f32[2,1,256], index: 0, kind: input, shape index: {}, may-alias: {0,3}]
  %s1 = inlined_call_operand.vmem [shape: f32[1,256], index: 1, kind: input, shape index: {}]
  %s2 = inlined_call_operand.vmem [shape: f32[1,256], index: 2, kind: input, shape index: {}]
  %s3 = inlined_call_operand.hbm [shape: f32[2,1,256], index: 3, kind: output, shape index: {}, may-alias: {0,3}]
  %s4 = sld [smem:[#allocation0]]
  $region49: #{tpu_custom_call.1} parent=0
    _
  %s6 = ssub.s32 1, %s4
  %s7 = scalar_select 0, %s6, %s4
  $region1: #{tpu_custom_call.1} parent=0
    #allocation2 [shape = 'u8[2048]{0}', space=vmem, size = 0x800, scoped, tag = 'input window, operand 0']
    #allocation3 [shape = 's32[2]{0}', space=sflag, size = 0x8, scoped, tag = 'scoped memory for tpu_custom_call.1']
    #allocation4 [shape = 's32[2]{0}', space=sflag, size = 0x8, scoped, tag = 'scoped memory for tpu_custom_call.1']
    #allocation5 [shape = 'u8[2048]{0}', space=vmem, size = 0x800, scoped, tag = 'output window, operand 0']
    %8 = vsyncpa [#allocation3], 0
    %s9 = scalar_lea.sflag [#allocation3], 1
    %10 = vsyncpa %s9, 0
    %11 = vsyncpa [#allocation4], 0
    %s12 = scalar_lea.sflag [#allocation4], 1
    %13 = vsyncpa %s12, 0
    loop: start=0, step=1, limit=4
    $region2: #{tpu_custom_call.1} parent=1 // loop_pre_header
      _
    $region3: #{tpu_custom_call.1} parent=1 // loop_header
      %s15 = sphi 0, %s19
      %p16 = scmp.ge.s32.totalorder %s15, 4
      %s22 = sphi 0, %s34
      %s23 = sphi 0, %s30
      %s24 = sphi 0, %s22
      %s25 = sphi 0, %s23
      %s26 = sphi 0, %s24
      %s27 = sphi 0, %s25
      %s39 = sphi 0, %s41
      %s42 = sphi 0, %s39
      %s43 = sphi 0, %s42
      %s59 = sphi 0, %s43
      %s63 = sphi 0, %s63
      %s65 = sphi 0, %s63
      %s66 = sphi 0, %s65
      %s80 = sphi 0, %s66
      %s84 = sphi 0, %s84
      %s86 = sphi 0, %s84
      %s87 = sphi 0, %s86
      %s101 = sphi 0, %s87
      %s109 = sphi 0, %s111
      %s112 = sphi 0, %s109
      %s113 = sphi 0, %s112
      %s129 = sphi 0, %s113
    $region4: #{tpu_custom_call.1} parent=1 // loop_header_branch
      %18 = sbr.rel (%p16) target = $region8
    $region5: #{tpu_custom_call.1} parent=1 // loop_body
      %s20 = ssub.s32 %s15, 1
      %s21 = ssub.s32 %s15, 2
      %s28 = sadd.s32 1, %s23
      %p29 = scmp.ge.s32.totalorder %s28, 1
      %s30 = scalar_select %p29, 0, %s28
      %s31 = sadd.s32 1, %s22
      %s32 = scalar_select %p29, %s31, %s22
      %p33 = scmp.ge.s32.totalorder %s32, 2
      %s34 = scalar_select %p33, 0, %s32
      %s35 = ssub.s32 %s22, %s34
      %s36 = ssub.s32 %s23, %s30
      %s37 = sor.u32 %s35, %s36
      %p38 = scmp.eq.s32.totalorder %s37, 0
      %s40 = sadd.s32 %s39, 1
      %s41 = scalar_select %p38, %s39, %s40
      %p44 = pneg %p38
      %p45 = scmp.eq.s32.totalorder %s15, 1
      %p46 = por %p44, %p45
      %p47 = scmp.ne.s32.totalorder %s39, %s42
      %p48 = scmp.eq.s32.totalorder %s15, 0
      %p49 = por %p47, %p48
      %p50 = scmp.ne.s32.totalorder %s39, %s42
      %p51 = scmp.eq.s32.totalorder %s20, 1
      %p52 = por %p50, %p51
      %p53 = scmp.ne.s32.totalorder %s42, %s43
      %p54 = scmp.eq.s32.totalorder %s20, 0
      %p55 = por %p53, %p54
      %p56 = scmp.ne.s32.totalorder %s42, %s43
      %p57 = scmp.eq.s32.totalorder %s21, 1
      %p58 = por %p56, %p57
      %p60 = scmp.ne.s32.totalorder %s43, %s59
      %p61 = scmp.eq.s32.totalorder %s21, 0
      %p62 = por %p60, %p61
      %s64 = sadd.s32 %s63, 1
      %p67 = scmp.eq.s32.totalorder %s15, 1
      %p68 = scmp.ne.s32.totalorder %s63, %s65
      %p69 = scmp.eq.s32.totalorder %s15, 0
      %p70 = por %p68, %p69
      %p71 = scmp.ne.s32.totalorder %s63, %s65
      %p72 = scmp.eq.s32.totalorder %s20, 1
      %p73 = por %p71, %p72
      %p74 = scmp.ne.s32.totalorder %s65, %s66
      %p75 = scmp.eq.s32.totalorder %s20, 0
      %p76 = por %p74, %p75
      %p77 = scmp.ne.s32.totalorder %s65, %s66
      %p78 = scmp.eq.s32.totalorder %s21, 1
      %p79 = por %p77, %p78
      %p81 = scmp.ne.s32.totalorder %s66, %s80
      %p82 = scmp.eq.s32.totalorder %s21, 0
      %p83 = por %p81, %p82
      %s85 = sadd.s32 %s84, 1
      %p88 = scmp.eq.s32.totalorder %s15, 1
      %p89 = scmp.ne.s32.totalorder %s84, %s86
      %p90 = scmp.eq.s32.totalorder %s15, 0
      %p91 = por %p89, %p90
      %p92 = scmp.ne.s32.totalorder %s84, %s86
      %p93 = scmp.eq.s32.totalorder %s20, 1
      %p94 = por %p92, %p93
      %p95 = scmp.ne.s32.totalorder %s86, %s87
      %p96 = scmp.eq.s32.totalorder %s20, 0
      %p97 = por %p95, %p96
      %p98 = scmp.ne.s32.totalorder %s86, %s87
      %p99 = scmp.eq.s32.totalorder %s21, 1
      %p100 = por %p98, %p99
      %p102 = scmp.ne.s32.totalorder %s87, %s101
      %p103 = scmp.eq.s32.totalorder %s21, 0
      %p104 = por %p102, %p103
      %s105 = ssub.s32 %s22, %s34
      %s106 = ssub.s32 %s23, %s30
      %s107 = sor.u32 %s105, %s106
      %p108 = scmp.eq.s32.totalorder %s107, 0
      %s110 = sadd.s32 %s109, 1
      %s111 = scalar_select %p108, %s109, %s110
      %p114 = pneg %p108
      %p115 = scmp.eq.s32.totalorder %s15, 1
      %p116 = por %p114, %p115
      %p117 = scmp.ne.s32.totalorder %s109, %s112
      %p118 = scmp.eq.s32.totalorder %s15, 0
      %p119 = por %p117, %p118
      %p120 = scmp.ne.s32.totalorder %s109, %s112
      %p121 = scmp.eq.s32.totalorder %s20, 1
      %p122 = por %p120, %p121
      %p123 = scmp.ne.s32.totalorder %s112, %s113
      %p124 = scmp.eq.s32.totalorder %s20, 0
      %p125 = por %p123, %p124
      %p126 = scmp.ne.s32.totalorder %s112, %s113
      %p127 = scmp.eq.s32.totalorder %s21, 1
      %p128 = por %p126, %p127
      %p130 = scmp.ne.s32.totalorder %s113, %s129
      %p131 = scmp.eq.s32.totalorder %s21, 0
      %p132 = por %p130, %p131
      %p133 = scmp.le.s32.totalorder 1, %s15
      %p134 = scmp.lt.s32.totalorder %s15, 3
      %p135 = pnand %p133, %p134
      %p136 = pneg %p135
      // Predicated region
      $region9: #{tpu_custom_call.1} parent=5 // pred_check
        _
      $region10: #{tpu_custom_call.1} parent=5 // pred_check_branch
        %138 = sbr.rel (%p135) target = $region12
      $region11: #{tpu_custom_call.1} parent=5 // pred_region
        %s139 = ssub.s32 %s15, 1
        // Predicated region
        $region13: #{tpu_custom_call.1} parent=11 // pred_check
          %p140 = pneg %p76
        $region14: #{tpu_custom_call.1} parent=11 // pred_check_branch
          %142 = sbr.rel (%p140) target = $region16
        $region15: #{tpu_custom_call.1} parent=11 // pred_region
          _
        $region16: #{tpu_custom_call.1} parent=11 // pred_fallthru
          _
        // Predicated region
        $region17: #{tpu_custom_call.1} parent=11 // pred_check
          %p143 = pneg %p97
        $region18: #{tpu_custom_call.1} parent=11 // pred_check_branch
          %145 = sbr.rel (%p143) target = $region20
        $region19: #{tpu_custom_call.1} parent=11 // pred_region
          _
        $region20: #{tpu_custom_call.1} parent=11 // pred_fallthru
          _
      $region12: #{tpu_custom_call.1} parent=5 // pred_fallthru
        _
      %p146 = scmp.lt.s32.totalorder %s15, 2
      // Predicated region
      $region21: #{tpu_custom_call.1} parent=5 // pred_check
        %p147 = pneg %p146
      $region22: #{tpu_custom_call.1} parent=5 // pred_check_branch
        %149 = sbr.rel (%p147) target = $region24
      $region23: #{tpu_custom_call.1} parent=5 // pred_region
        // Predicated region
        $region25: #{tpu_custom_call.1} parent=23 // pred_check
          %p150 = pneg %p49
        $region26: #{tpu_custom_call.1} parent=23 // pred_check_branch
          %152 = sbr.rel (%p150) target = $region28
        $region27: #{tpu_custom_call.1} parent=23 // pred_region
          %s153 = sand.u32 %s39, 1
          %s154 = scalar_lea.sflag [#allocation3], %s153
          %s155 = sand.u32 %s39, 1
          %s156 = smul.addr %s155, 2
          %s157 = scalar_lea.vmem [#allocation2], %s156
          %s159 = ssub.s32 32, 32
          %160 = vsyncadd %s154, %s159
          %s161 = smul.addr %s23, 2
          %s162 = smul.addr %s22, 2
          %s163 = sadd.s32 %s161, %s162
          %s164 = smul.addr %s163, 16
          %s165 = scalar_lea.hbm %s0, %s164
          %s167 = sshll.u32 %s157, 4
          %s168 = int_to_ptr.vmem [resolvable:$true] %s167
          %170 = dma.hbm_to_vmem [thread:$0]  %s165, 32, %s168, %s154
        $region28: #{tpu_custom_call.1} parent=23 // pred_fallthru
          _
      $region24: #{tpu_custom_call.1} parent=5 // pred_fallthru
        _
      %p171 = scmp.le.s32.totalorder 1, %s15
      %p172 = scmp.lt.s32.totalorder %s15, 3
      %p173 = pnand %p171, %p172
      %p174 = pneg %p173
      // Predicated region
      $region29: #{tpu_custom_call.1} parent=5 // pred_check
        _
      $region30: #{tpu_custom_call.1} parent=5 // pred_check_branch
        %176 = sbr.rel (%p173) target = $region32
      $region31: #{tpu_custom_call.1} parent=5 // pred_region
        %s177 = ssub.s32 %s15, 1
        %s178 = sand.u32 %s42, 1
        %s179 = scalar_lea.sflag [#allocation3], %s178
        %s180 = sand.u32 %s42, 1
        %s181 = smul.addr %s180, 2
        %s182 = scalar_lea.vmem [#allocation2], %s181
        // Predicated region
        $region33: #{tpu_custom_call.1} parent=31 // pred_check
          %p183 = pneg %p55
        $region34: #{tpu_custom_call.1} parent=31 // pred_check_branch
          %185 = sbr.rel (%p183) target = $region36
        $region35: #{tpu_custom_call.1} parent=31 // pred_region
          %186 = dma.done %s179, 32
        $region36: #{tpu_custom_call.1} parent=31 // pred_fallthru
          _
        %s187 = sand.u32 %s42, 1
        %s188 = scalar_lea.sflag [#allocation3], %s187
        %s189 = sand.u32 %s42, 1
        %s190 = smul.addr %s189, 2
        %s191 = scalar_lea.vmem [#allocation2], %s190
        %p192 = pneg %p55
        %p193 = pneg %p52
        %p194 = pneg %p76
        %p195 = pneg %p73
        %p196 = pneg %p97
        %p197 = pneg %p94
        %p198 = pneg %p125
        %p199 = pneg %p122
        %s200 = sand.u32 %s112, 1
        %s201 = scalar_lea.sflag [#allocation4], %s200
        %s202 = sand.u32 %s112, 1
        %s203 = smul.addr %s202, 2
        %s204 = scalar_lea.vmem [#allocation5], %s203
        %v205 = vld [vmem:[%s182] sm:$0x3]
        %v206 = vlaneseq
        %v207 = vshrl.u32 %v206, 7
        %v208 = vstv %s25
        %v209 = vadd.s32 %v208, %v207
        %v210 = vcvt.s32.f32 %v209
        %v211 = vld [vmem:[%s1] sm:$0x3]
        %v213 = vlaneseq
        %v214 = vshrl.u32 %v213, 7
        %v215 = vsub.s32 0, %v214
        %v216 = vrot.slane %v211, %v215
        %v217 = vlaneseq
        %v218 = vshrl.u32 %v217, 7
        %v219 = vsub.s32 1, %v218
        %v220 = vrot.slane %v211, %v219
        %v223 = vmul.f32 %v210, %v216
        %v224 = vmul.f32 %v210, %v220
        %v225 = vld [vmem:[%s2] sm:$0x3]
        %v227 = vlaneseq
        %v228 = vshrl.u32 %v227, 7
        %v229 = vsub.s32 0, %v228
        %v230 = vrot.slane %v225, %v229
        %v231 = vlaneseq
        %v232 = vshrl.u32 %v231, 7
        %v233 = vsub.s32 1, %v232
        %v234 = vrot.slane %v225, %v233
        %v237 = vadd.f32 %v223, %v230
        %v238 = vadd.f32 %v224, %v234
        %v239 = vand.u32 2147483647, %v237
        %vm240 = vcmp.le.f32.partialorder %v239, 0.7853982
        %vm241 = vcmp.lt.s32.totalorder %v237, 0
        %v242 = vand.u32 %v237, 2139095040
        %v243 = vshrl.u32 %v242, 23
        %v244 = vsub.s32 %v243, 127
        %v245 = vand.u32 2147483647, %v237
        %v246 = vand.u32 %v245, 8388607
        %v247 = vor.u32 %v246, 8388608
        %v248 = vsub.s32 0, %v247
        %v249 = vadd.s32 %v244, 1
        %vm250 = vcmp.gt.s32.totalorder %v249, 0
        %v251 = vsel %vm250, %v249, 0
        %v252 = vshrl.u32 %v251, 5
        %v253 = vand.u32 %v251, 31
        %v254 = vsub.s32 32, %v253
        %v255 = vshrl.u32 683565275, %v254
        %v256 = vshll.u32 683565275, %v253
        %v257 = vshrl.u32 2475754826, %v254
        %v258 = vor.u32 %v256, %v257
        %v259 = vshll.u32 2475754826, %v253
        %v260 = vshrl.u32 2131351028, %v254
        %v261 = vor.u32 %v259, %v260
        %v262 = vshll.u32 2131351028, %v253
        %v263 = vshrl.u32 2102212464, %v254
        %v264 = vor.u32 %v262, %v263
        %v265 = vshll.u32 2102212464, %v253
        %v266 = vshrl.u32 920167782, %v254
        %v267 = vor.u32 %v265, %v266
        %v268 = vshll.u32 920167782, %v253
        %v269 = vshrl.u32 1326507024, %v254
        %v270 = vor.u32 %v268, %v269
        %vm271 = vcmp.lt.s32.totalorder %v252, 1
        %vm272 = vcmp.lt.s32.totalorder %v252, 2
        %vm273 = vcmp.lt.s32.totalorder %v252, 3
        %vm274 = vcmp.lt.s32.totalorder %v252, 4
        %v275 = vsel %vm271, %v255, %v258
        %v276 = vsel %vm274, %v264, 2102212464
        %v277 = vsel %vm273, %v261, %v276
        %v278 = vsel %vm272, %v275, %v277
        %v279 = vsel %vm271, %v258, %v261
        %v280 = vsel %vm274, %v267, 920167782
        %v281 = vsel %vm273, %v264, %v280
        %v282 = vsel %vm272, %v279, %v281
        %v283 = vsel %vm271, %v261, %v264
        %v284 = vsel %vm274, %v270, 1326507024
        %v285 = vsel %vm273, %v267, %v284
        %v286 = vsel %vm272, %v283, %v285
        %v287 = vshll.u32 %v247, 8
        %v288 = vmul.u32.u64.compose %v287, %v286
        %v289 = vextract.low.u32 %v288
        %v290 = vextract.high.u32 %v288
        %v291 = vmul.u32.u64.compose %v287, %v282
        %v292 = vextract.low.u32 %v291
        %v293 = vextract.high.u32 %v291
        %v294 = vmul.u32 %v287, %v278
        %v295 = vadd.s32 %v290, %v292
        %vm296 = vc.u32 %v290, %v292
        %v297 = vadd.s32 %v293, 1
        %v298 = vsel %vm296, %v297, %v293
        %v299 = vadd.s32 %v294, %v298
        %v300 = vadd.s32 %v299, 536870912
        %v301 = vshrl.u32 %v300, 30
        %v302 = vshll.u32 %v301, 30
        %v303 = vsub.s32 %v299, %v302
        %vm304 = vcmp.lt.s32.totalorder %v303, 0
        %v305 = vsub.s32 0, %v303
        %v306 = vsel %vm304, %v305, %v303
        %v307 = vclz %v306
        %v308 = vsub.s32 %v307, 2
        %vm309 = vcmp.gt.s32.totalorder 0, %v308
        %v310 = vsel %vm309, 0, %v308
        %v311 = vsub.s32 32, %v310
        %v312 = vshll.u32 %v303, %v310
        %v313 = vshrl.u32 %v295, %v311
        %v314 = vor.u32 %v312, %v313
        %v315 = vsub.s32 4294967266, %v310
        %v316 = vadd.s32 %v315, 127
        %v317 = vshll.u32 %v316, 23
        %v318 = vor.u32 4788187, %v317
        %v319 = vand.u32 2147483647, %v318
        %v321 = vcvt.s32.f32 %v314
        %v322 = vmul.f32 %v321, %v319
        %v323 = vxor.u32 %v322, 2147483648
        %v324 = vsel %vm241, %v323, %v322
        %v325 = vsub.s32 4, %v301
        %v326 = vsel %vm241, %v325, %v301
        %v327 = vsel %vm240, %v237, %v324
        %v328 = vsel %vm240, 0, %v326
        %v329 = vcosq.f32.pop %v327
        %v330 = vsinq.f32.pop %v327
        %vm331 = vweird.f32 %v237
        %v332 = vadd.s32 %v328, 3
        %v333 = vand.u32 %v332, 3
        %vm334 = vcmp.lt.s32.totalorder %v333, 2
        %vm335 = vcmp.eq.s32.totalorder %v333, 0
        %v336 = vxor.u32 %v330, 2147483648
        %v337 = vsel %vm335, %v329, %v336
        %vm338 = vcmp.eq.s32.totalorder %v333, 2
        %v339 = vxor.u32 %v329, 2147483648
        %v340 = vsel %vm338, %v339, %v330
        %v341 = vsel %vm334, %v337, %v340
        %v342 = vsel %vm331, nan, %v341
        %v343 = vand.u32 2147483647, %v238
        %vm344 = vcmp.le.f32.partialorder %v343, 0.7853982
        %vm345 = vcmp.lt.s32.totalorder %v238, 0
        %v346 = vand.u32 %v238, 2139095040
        %v347 = vshrl.u32 %v346, 23
        %v348 = vsub.s32 %v347, 127
        %v349 = vand.u32 2147483647, %v238
        %v350 = vand.u32 %v349, 8388607
        %v351 = vor.u32 %v350, 8388608
        %v352 = vsub.s32 0, %v351
        %v353 = vadd.s32 %v348, 1
        %vm354 = vcmp.gt.s32.totalorder %v353, 0
        %v355 = vsel %vm354, %v353, 0
        %v356 = vshrl.u32 %v355, 5
        %v357 = vand.u32 %v355, 31
        %v358 = vsub.s32 32, %v357
        %v359 = vshrl.u32 683565275, %v358
        %v360 = vshll.u32 683565275, %v357
        %v361 = vshrl.u32 2475754826, %v358
        %v362 = vor.u32 %v360, %v361
        %v363 = vshll.u32 2475754826, %v357
        %v364 = vshrl.u32 2131351028, %v358
        %v365 = vor.u32 %v363, %v364
        %v366 = vshll.u32 2131351028, %v357
        %v367 = vshrl.u32 2102212464, %v358
        %v368 = vor.u32 %v366, %v367
        %v369 = vshll.u32 2102212464, %v357
        %v370 = vshrl.u32 920167782, %v358
        %v371 = vor.u32 %v369, %v370
        %v372 = vshll.u32 920167782, %v357
        %v373 = vshrl.u32 1326507024, %v358
        %v374 = vor.u32 %v372, %v373
        %vm375 = vcmp.lt.s32.totalorder %v356, 1
        %vm376 = vcmp.lt.s32.totalorder %v356, 2
        %vm377 = vcmp.lt.s32.totalorder %v356, 3
        %vm378 = vcmp.lt.s32.totalorder %v356, 4
        %v379 = vsel %vm375, %v359, %v362
        %v380 = vsel %vm378, %v368, 2102212464
        %v381 = vsel %vm377, %v365, %v380
        %v382 = vsel %vm376, %v379, %v381
        %v383 = vsel %vm375, %v362, %v365
        %v384 = vsel %vm378, %v371, 920167782
        %v385 = vsel %vm377, %v368, %v384
        %v386 = vsel %vm376, %v383, %v385
        %v387 = vsel %vm375, %v365, %v368
        %v388 = vsel %vm378, %v374, 1326507024
        %v389 = vsel %vm377, %v371, %v388
        %v390 = vsel %vm376, %v387, %v389
        %v391 = vshll.u32 %v351, 8
        %v392 = vmul.u32.u64.compose %v391, %v390
        %v393 = vextract.low.u32 %v392
        %v394 = vextract.high.u32 %v392
        %v395 = vmul.u32.u64.compose %v391, %v386
        %v396 = vextract.low.u32 %v395
        %v397 = vextract.high.u32 %v395
        %v398 = vmul.u32 %v391, %v382
        %v399 = vadd.s32 %v394, %v396
        %vm400 = vc.u32 %v394, %v396
        %v401 = vadd.s32 %v397, 1
        %v402 = vsel %vm400, %v401, %v397
        %v403 = vadd.s32 %v398, %v402
        %v404 = vadd.s32 %v403, 536870912
        %v405 = vshrl.u32 %v404, 30
        %v406 = vshll.u32 %v405, 30
        %v407 = vsub.s32 %v403, %v406
        %vm408 = vcmp.lt.s32.totalorder %v407, 0
        %v409 = vsub.s32 0, %v407
        %v410 = vsel %vm408, %v409, %v407
        %v411 = vclz %v410
        %v412 = vsub.s32 %v411, 2
        %vm413 = vcmp.gt.s32.totalorder 0, %v412
        %v414 = vsel %vm413, 0, %v412
        %v415 = vsub.s32 32, %v414
        %v416 = vshll.u32 %v407, %v414
        %v417 = vshrl.u32 %v399, %v415
        %v418 = vor.u32 %v416, %v417
        %v419 = vsub.s32 4294967266, %v414
        %v420 = vadd.s32 %v419, 127
        %v421 = vshll.u32 %v420, 23
        %v422 = vor.u32 4788187, %v421
        %v423 = vand.u32 2147483647, %v422
        %v425 = vcvt.s32.f32 %v418
        %v426 = vmul.f32 %v425, %v423
        %v427 = vxor.u32 %v426, 2147483648
        %v428 = vsel %vm345, %v427, %v426
        %v429 = vsub.s32 4, %v405
        %v430 = vsel %vm345, %v429, %v405
        %v431 = vsel %vm344, %v238, %v428
        %v432 = vsel %vm344, 0, %v430
        %v433 = vcosq.f32.pop %v431
        %v434 = vsinq.f32.pop %v431
        %vm435 = vweird.f32 %v238
        %v436 = vadd.s32 %v432, 3
        %v437 = vand.u32 %v436, 3
        %vm438 = vcmp.lt.s32.totalorder %v437, 2
        %vm439 = vcmp.eq.s32.totalorder %v437, 0
        %v440 = vxor.u32 %v434, 2147483648
        %v441 = vsel %vm439, %v433, %v440
        %vm442 = vcmp.eq.s32.totalorder %v437, 2
        %v443 = vxor.u32 %v433, 2147483648
        %v444 = vsel %vm442, %v443, %v434
        %v445 = vsel %vm438, %v441, %v444
        %v446 = vsel %vm435, nan, %v445
        %v449 = vcombine.low %v342, %v446
        %v451 = vunpack.c.l.s4 1966171168
        %v452 = vunpack.c.0.s8 %v451
        %v453 = vlaneseq
        %v454 = vshrl.u32 %v453, 7
        %v455 = vsub.s32 %v452, %v454
        %v456 = vrot.slane %v449, %v455
        %v458 = vunpack.c.l.s4 1966171168
        %v459 = vunpack.c.0.s8 %v458
        %v460 = vlaneseq
        %v461 = vshrl.u32 %v460, 7
        %v462 = vsub.s32 %v459, %v461
        %v463 = vrot.slane %v456, %v462
        %v465 = vadd.f32 %v205, %v463
        %v466 = vlaneseq
        %vm467 = vcmp.ge.s32.totalorder %v466, 0
        %vm468 = vcmp.lt.s32.totalorder %v466, 256
        %vm469 = vmand %vm467, %vm468
        %470 = vst.msk [vmem:[%s204] sm:$0x3] %vm469, %v465
        %s471 = sand.u32 %s112, 1
        %s472 = scalar_lea.sflag [#allocation4], %s471
        %s473 = sand.u32 %s112, 1
        %s474 = smul.addr %s473, 2
        %s475 = scalar_lea.vmem [#allocation5], %s474
        // Predicated region
        $region37: #{tpu_custom_call.1} parent=31 // pred_check
          %p476 = pneg %p122
        $region38: #{tpu_custom_call.1} parent=31 // pred_check_branch
          %478 = sbr.rel (%p476) target = $region40
        $region39: #{tpu_custom_call.1} parent=31 // pred_region
          %s480 = ssub.s32 32, 32
          %481 = vsyncadd %s472, %s480
          %s482 = smul.addr %s25, 2
          %s483 = smul.addr %s24, 2
          %s484 = sadd.s32 %s482, %s483
          %s485 = smul.addr %s484, 16
          %s486 = scalar_lea.hbm %s3, %s485
          %s488 = sshll.u32 %s475, 4
          %s489 = int_to_ptr.vmem [resolvable:$true] %s488
          %491 = dma.vmem_to_hbm [thread:$0]  %s489, 32, %s486, %s472
        $region40: #{tpu_custom_call.1} parent=31 // pred_fallthru
          _
      $region32: #{tpu_custom_call.1} parent=5 // pred_fallthru
        _
      %p492 = scmp.le.s32.totalorder 2, %s15
      // Predicated region
      $region41: #{tpu_custom_call.1} parent=5 // pred_check
        %p493 = pneg %p492
      $region42: #{tpu_custom_call.1} parent=5 // pred_check_branch
        %495 = sbr.rel (%p493) target = $region44
      $region43: #{tpu_custom_call.1} parent=5 // pred_region
        %s496 = ssub.s32 %s15, 2
        // Predicated region
        $region45: #{tpu_custom_call.1} parent=43 // pred_check
          %p497 = pneg %p128
        $region46: #{tpu_custom_call.1} parent=43 // pred_check_branch
          %499 = sbr.rel (%p497) target = $region48
        $region47: #{tpu_custom_call.1} parent=43 // pred_region
          %s500 = sand.u32 %s113, 1
          %s501 = scalar_lea.sflag [#allocation4], %s500
          %s502 = sand.u32 %s113, 1
          %s503 = smul.addr %s502, 2
          %s504 = scalar_lea.vmem [#allocation5], %s503
          %505 = dma.done %s501, 32
        $region48: #{tpu_custom_call.1} parent=43 // pred_fallthru
          _
      $region44: #{tpu_custom_call.1} parent=5 // pred_fallthru
        _
    $region6: #{tpu_custom_call.1} parent=1 // loop_footer
      %s19 = sadd.s32 1, %s15
    $region7: #{tpu_custom_call.1} parent=1 // loop_footer_branch
      %14 = sbr.rel target = $region3
    $region8: #{tpu_custom_call.1} parent=1 // loop_exit
      _
    %506 = vsyncpa [#allocation3], 1
    %s507 = scalar_lea.sflag [#allocation3], 1
    %508 = vsyncpa %s507, 1
    %509 = vsyncpa [#allocation4], 1
    %s510 = scalar_lea.sflag [#allocation4], 1
    %511 = vsyncpa %s510, 1

</llo_original>
